<compile_context>
chip_gen: v7x
topology: tpu7x:2x2x1
jax: 0.10.0
libtpu: 0.0.40
codegen_flags: <defaults>
</compile_context>

<pallas_src>
import functools

import jax
import jax.numpy as jnp
import numpy as np
from jax import lax
from jax.experimental import pallas as pl
from jax.experimental.pallas import tpu as pltpu


_LANE = 128
_MAX_K_TILE = 8192                 # lanes; cap per grid step
_FEAT_VMEM_BUDGET = 16 << 20       # bytes for the double-buffered feature stream


def _round_up(x, m):
    return (x + m - 1) // m * m


def _choose_k_tile(m, k, itemsize, max_k_tile=None):
    """Largest 128-multiple K tile whose double-buffer fits the feature budget."""
    cap = _MAX_K_TILE if max_k_tile is None else max(_LANE, max_k_tile // _LANE * _LANE)
    by_budget = _FEAT_VMEM_BUDGET // (2 * max(_round_up(m, 8), 8) * itemsize)
    by_budget = max(_LANE, (by_budget // _LANE) * _LANE)
    tile = min(cap, by_budget)
    if k <= tile:
        return k, 1                     # single step; block == full K, no masking
    return tile, -(-k // tile)          # ceil-div grid; last tile masked in-kernel


def _vmem_limit_bytes(m, k_tile, itemsize):
    """Explicit scoped-VMEM limit: features (2 bufs) + Gram-sized buffers + margin."""
    gram_bytes = _round_up(m, 8) * _round_up(m, _LANE) * 4
    need = 2 * _round_up(m, 8) * k_tile * itemsize + 4 * gram_bytes + (2 << 20)
    # >=24 MiB so small shapes keep default-ish headroom; <=48 MiB stays under
    # v7x's 64 MiB physical VMEM (v5e/v6e have 128 MiB physical).
    return int(min(max(need, 24 << 20), 48 << 20))


# ------------------------------------------------------------------ kernels --

def _load_tile(f_ref, *, k_total, k_tile, compute_dtype):
    """Load the current K tile, zero out-of-range lanes of the ragged last tile,
    and optionally down-cast for single-pass MXU feed (f32 accumulation kept)."""
    f = f_ref[...]
    rem = k_total % k_tile
    if rem:                                            # static: only if K is ragged
        kk = pl.program_id(0)
        limit = jnp.where(kk == pl.num_programs(0) - 1, rem, k_tile)
        col = lax.broadcasted_iota(jnp.int32, f.shape, 1)
        f = jnp.where(col < limit, f, jnp.zeros_like(f))
    if compute_dtype is not None and f.dtype != jnp.dtype(compute_dtype):
        f = f.astype(compute_dtype)
    return f


def _gram_tile(f):
    """F_tile @ F_tile.T on the MXU (transposed-RHS feed, f32 accumulation)."""
    return lax.dot_general(f, f, (((1,), (1,)), ((), ())),
                           preferred_element_type=jnp.float32)


def _gram_kernel(f_ref, g_ref, *, inv_scale, k_total, k_tile, compute_dtype):
    """Gram only (used once for the detached target).  Accumulates directly into
    the resident output block; scaled at finalize."""
    kk = pl.program_id(0)

    @pl.when(kk == 0)
    def _init():
        g_ref[...] = jnp.zeros_like(g_ref)

    f = _load_tile(f_ref, k_total=k_total, k_tile=k_tile, compute_dtype=compute_dtype)
    g_ref[...] += _gram_tile(f)

    @pl.when(kk == pl.num_programs(0) - 1)
    def _finalize():
        g_ref[...] = g_ref[...] * inv_scale


def _style_loss_kernel(f_ref, t_ref, loss_ref, acc_ref, *,
                       inv_scale, inv_n, k_total, k_tile, compute_dtype):
    """Fused Gram + MSE-vs-target; the Gram of the input never leaves VMEM."""
    kk = pl.program_id(0)

    @pl.when(kk == 0)
    def _init():
        acc_ref[...] = jnp.zeros_like(acc_ref)

    f = _load_tile(f_ref, k_total=k_total, k_tile=k_tile, compute_dtype=compute_dtype)
    acc_ref[...] += _gram_tile(f)

    @pl.when(kk == pl.num_programs(0) - 1)
    def _finalize():
        diff = acc_ref[...] * inv_scale - t_ref[...]
        loss_ref[0, 0] = jnp.sum(diff * diff) * inv_n


# ----------------------------------------------------------------- wrappers --

def _prep_features(x, max_k_tile=None):
    """NCHW -> (a*b, c*d) view (no HBM copy, no padding) + K tiling choice."""
    a, b, c, d = x.shape
    m, k = a * b, c * d
    feats = x.reshape(m, k)                      # contiguous reshape: free view
    itemsize = jnp.dtype(feats.dtype).itemsize   # streamed at native width
    k_tile, num_k = _choose_k_tile(m, k, itemsize, max_k_tile)
    return feats, m, k, k_tile, num_k, itemsize


def gram_matrix(x, compute_dtype=None, max_k_tile=None):
    """Exact PyTorch gram_matrix: (a*b, a*b) float32 = F @ F.T / (a*b*c*d)."""
    feats, m, k, k_tile, num_k, itemsize = _prep_features(x, max_k_tile)
    kernel = functools.partial(
        _gram_kernel,
        inv_scale=1.0 / float(m * k),            # 1/(a*b*c*d), exact Python float
        k_total=k, k_tile=k_tile, compute_dtype=compute_dtype)
    return pl.pallas_call(
        kernel,
        out_shape=jax.ShapeDtypeStruct((m, m), jnp.float32),
        grid_spec=pltpu.PrefetchScalarGridSpec(
            num_scalar_prefetch=0,
            grid=(num_k,),
            in_specs=[pl.BlockSpec((m, k_tile), lambda kk: (0, kk))],   # streamed K
            out_specs=pl.BlockSpec((m, m), lambda kk: (0, 0))),         # resident acc
        compiler_params=pltpu.CompilerParams(
            dimension_semantics=("arbitrary",),
            vmem_limit_bytes=_vmem_limit_bytes(m, k_tile, itemsize)),
        cost_estimate=pl.CostEstimate(
            flops=2 * m * m * k, transcendentals=0,
            bytes_accessed=m * k * itemsize + m * m * 4),
    )(feats)


def _style_loss(x, target, compute_dtype=None, max_k_tile=None):
    """Fused Gram(x) + MSE against the target Gram; returns scalar f32 loss."""
    feats, m, k, k_tile, num_k, itemsize = _prep_features(x, max_k_tile)
    assert target.shape == (m, m), "target/input style-layer shape mismatch"
    kernel = functools.partial(
        _style_loss_kernel,
        inv_scale=1.0 / float(m * k),            # 1/(a*b*c*d)
        inv_n=1.0 / float(m * m),                # MSE normalizer over (a*b)^2
        k_total=k, k_tile=k_tile, compute_dtype=compute_dtype)
    loss = pl.pallas_call(
        kernel,
        out_shape=jax.ShapeDtypeStruct((1, 1), jnp.float32),
        grid_spec=pltpu.PrefetchScalarGridSpec(
            num_scalar_prefetch=0,
            grid=(num_k,),
            in_specs=[
                pl.BlockSpec((m, k_tile), lambda kk: (0, kk)),   # streamed features
                pl.BlockSpec((m, m), lambda kk: (0, 0)),         # resident target
            ],
            out_specs=pl.BlockSpec(
                (1, 1), lambda kk: (0, 0),
                memory_space=pltpu.MemorySpace.SMEM),            # scalar loss
            scratch_shapes=[pltpu.VMEM((m, m), jnp.float32)]),   # f32 Gram acc
        compiler_params=pltpu.CompilerParams(
            dimension_semantics=("arbitrary",),
            vmem_limit_bytes=_vmem_limit_bytes(m, k_tile, itemsize)),
        cost_estimate=pl.CostEstimate(
            flops=2 * m * m * k + 3 * m * m, transcendentals=0,
            bytes_accessed=m * k * itemsize + m * m * 4 + 4),
    )(feats, target.astype(jnp.float32))
    return loss[0, 0]


class StyleLoss:
    """Mirrors the PyTorch nn.Module: stores the detached target Gram; __call__
    computes self.loss via the fused Gram+MSE kernel and returns the input.
    compute_dtype=bf16 (default) runs the MXU single-pass with f32 accumulation;
    pass compute_dtype=jnp.float32 for near-exact f32 parity."""

    def __init__(self, target_feature, compute_dtype=jnp.bfloat16):
        self.compute_dtype = compute_dtype
        self.target = lax.stop_gradient(
            gram_matrix(target_feature, compute_dtype=compute_dtype))
        self.loss = None

    def __call__(self, x):
        self.loss = _style_loss(x, self.target, compute_dtype=self.compute_dtype)
        return x


# --------------------------------------------------------------------- main --

if __name__ == "__main__":
    key = jax.random.PRNGKey(0)
    k_tgt, k_in, k_in2 = jax.random.split(key, 3)

    # NCHW, small shapes: batch=2, channels=4, spatial=16x16  ->  m=8, k=256
    target_feature = jax.random.normal(k_tgt, (2, 4, 16, 16), dtype=jnp.float32)
    x = jax.random.normal(k_in, (2, 4, 16, 16), dtype=jnp.float32)

    # pure-JAX high-precision reference
    def gram_ref(t):
        a, b, c, d = t.shape
        f = t.reshape(a * b, c * d).astype(jnp.float32)
        return jnp.matmul(f, f.T, precision=lax.Precision.HIGHEST) / (a * b * c * d)

    G_ref = gram_ref(x)
    T_ref = gram_ref(target_feature)
    loss_ref = jnp.mean((G_ref - T_ref) ** 2)

    # --- f32 compute path (strict check) ---
    mod_f32 = StyleLoss(target_feature, compute_dtype=jnp.float32)
    out = jax.block_until_ready(mod_f32(x))
    loss_f32 = float(jax.block_until_ready(mod_f32.loss))
    G_kernel = jax.block_until_ready(gram_matrix(x))

    assert out.shape == x.shape and np.allclose(np.asarray(out), np.asarray(x))
    assert np.allclose(np.asarray(G_kernel), np.asarray(G_ref),
                       rtol=1e-3, atol=1e-4), "gram_matrix mismatch"
    assert np.allclose(loss_f32, float(loss_ref), rtol=2e-2, atol=1e-9), \
        (loss_f32, float(loss_ref))

    # --- default bf16 feature-compute path (perf path, looser tolerance) ---
    mod_bf16 = StyleLoss(target_feature)              # compute_dtype=bf16
    _ = jax.block_until_ready(mod_bf16(x))
    loss_bf16 = float(jax.block_until_ready(mod_bf16.loss))
    assert np.allclose(loss_bf16, float(loss_ref), rtol=1e-1, atol=1e-8), \
        (loss_bf16, float(loss_ref))

    # --- ragged-K / multi-tile path: force k_tile=128 on k=320 (masked last tile) ---
    x2 = jax.random.normal(k_in2, (2, 4, 16, 20), dtype=jnp.float32)
    G2 = jax.block_until_ready(gram_matrix(x2, max_k_tile=128))
    G2_ref = gram_ref(x2)
    assert np.allclose(np.asarray(G2), np.asarray(G2_ref),
                       rtol=1e-3, atol=1e-4), "ragged-K gram mismatch"

    print("KERNEL_OK")
</pallas_src>

<mosaic_0001>
module attributes {stable_mosaic.version = 11 : i64} {
  func.func @_gram_kernel(%arg0: i32, %arg1: memref<8x256xf32, #tpu.memory_space<vmem>>, %arg2: memref<8x8xf32, #tpu.memory_space<vmem>>) attributes {dimension_semantics = [#tpu.dimension_semantics<arbitrary>], iteration_bounds = array<i64: 1>, scalar_prefetch = 0 : i64, scratch_operands = 0 : i64, tpu.core_type = #tpu.core_type<tc>, window_params = [{transform_indices = @transform_0, window_bounds = array<i64: 8, 256>}, {pipeline_mode = #tpu.pipeline_mode<synchronous>, transform_indices = @transform_1, window_bounds = array<i64: 8, 8>}]} {
    %c0_i32 = arith.constant 0 : i32
    %0 = arith.cmpi eq, %arg0, %c0_i32 : i32
    %1 = arith.extui %0 : i1 to i32
    %c0_i32_0 = arith.constant 0 : i32
    %2 = arith.cmpi ne, %1, %c0_i32_0 : i32
    scf.if %2 {
      %cst_8 = arith.constant 0.000000e+00 : f32
      %11 = vector.broadcast %cst_8 : f32 to vector<8x8xf32>
      %c0_9 = arith.constant 0 : index
      %c0_10 = arith.constant 0 : index
      %12 = vector.load %arg2[%c0_9, %c0_10] : memref<8x8xf32, #tpu.memory_space<vmem>>, vector<8x8xf32>
      tpu.vector_store %arg2[%c0_9, %c0_10], %11 {strides = array<i32>} : memref<8x8xf32, #tpu.memory_space<vmem>>, vector<8x8xf32>,
    } else {
    }
    %c0 = arith.constant 0 : index
    %c0_1 = arith.constant 0 : index
    %3 = vector.load %arg1[%c0, %c0_1] : memref<8x256xf32, #tpu.memory_space<vmem>>, vector<8x256xf32>
    %c0_2 = arith.constant 0 : index
    %c0_3 = arith.constant 0 : index
    %4 = vector.load %arg2[%c0_2, %c0_3] : memref<8x8xf32, #tpu.memory_space<vmem>>, vector<8x8xf32>
    %cst = arith.constant dense<0.000000e+00> : vector<8x8xf32>
    %5 = tpu.matmul %3, %3, %cst {dimension_numbers = #tpu.dot_dimension_numbers<[1], [1], [0], [0], [0, 0, 1, 0], [], []>} : vector<8x256xf32>, vector<8x256xf32>, vector<8x8xf32> -> vector<8x8xf32>
    %6 = arith.addf %4, %5 : vector<8x8xf32>
    %c0_4 = arith.constant 0 : index
    %c0_5 = arith.constant 0 : index
    %7 = vector.load %arg2[%c0_4, %c0_5] : memref<8x8xf32, #tpu.memory_space<vmem>>, vector<8x8xf32>
    tpu.vector_store %arg2[%c0_4, %c0_5], %6 {strides = array<i32>} : memref<8x8xf32, #tpu.memory_space<vmem>>, vector<8x8xf32>,
    %c0_i32_6 = arith.constant 0 : i32
    %8 = arith.cmpi eq, %arg0, %c0_i32_6 : i32
    %9 = arith.extui %8 : i1 to i32
    %c0_i32_7 = arith.constant 0 : i32
    %10 = arith.cmpi ne, %9, %c0_i32_7 : i32
    scf.if %10 {
      %c0_8 = arith.constant 0 : index
      %c0_9 = arith.constant 0 : index
      %11 = vector.load %arg2[%c0_8, %c0_9] : memref<8x8xf32, #tpu.memory_space<vmem>>, vector<8x8xf32>
      %cst_10 = arith.constant 4.8828125E-4 : f32
      %12 = vector.broadcast %cst_10 : f32 to vector<8x8xf32>
      %13 = arith.mulf %11, %12 : vector<8x8xf32>
      %c0_11 = arith.constant 0 : index
      %c0_12 = arith.constant 0 : index
      %14 = vector.load %arg2[%c0_11, %c0_12] : memref<8x8xf32, #tpu.memory_space<vmem>>, vector<8x8xf32>
      tpu.vector_store %arg2[%c0_11, %c0_12], %13 {strides = array<i32>} : memref<8x8xf32, #tpu.memory_space<vmem>>, vector<8x8xf32>,
    } else {
    }
    return
  }
  func.func @transform_0(%arg0: i32) -> (i32, i32) {
    %c0_i32 = arith.constant 0 : i32
    %c0_i32_0 = arith.constant 0 : i32
    return %c0_i32, %arg0 : i32, i32
  }
  func.func @transform_1(%arg0: i32) -> (i32, i32) {
    %c0_i32 = arith.constant 0 : i32
    %c0_i32_0 = arith.constant 0 : i32
    %c0_i32_1 = arith.constant 0 : i32
    return %c0_i32, %c0_i32_0 : i32, i32
  }
}

</mosaic_0001>

<llo_original>
// kernel: tpu_custom_call.1
$region0: #{tpu_custom_call.1}
  #allocation0 [shape = 'u32[]', space=smem, size = 0x4, offset = 0x4, fixed_abs, tag = 'smem constant byte address 0x4 - core index']
  #allocation1 [shape = 'u32[144,128]{1,0:T(1,128)}', space=vmem, size = 0x12000, scoped, tag = 'internal scratch']
  %s0 = inlined_call_operand.hbm [shape: f32[8,256], index: 0, kind: input, shape index: {}]
  %s1 = inlined_call_operand.hbm [shape: f32[8,8], index: 1, kind: output, shape index: {}]
  %s2 = sld [smem:[#allocation0]]
  $region26: #{tpu_custom_call.1} parent=0
    _
  %s4 = ssub.s32 1, %s2
  %s5 = scalar_select 0, %s4, %s2
  $region1: #{tpu_custom_call.1} parent=0
    #allocation2 [shape = 'u8[8192]{0}', space=vmem, size = 0x2000, scoped, tag = 'input window, operand 0, single buffered']
    #allocation3 [shape = 's32[1]{0}', space=sflag, size = 0x4, scoped, tag = 'scoped memory for tpu_custom_call.1']
    #allocation4 [shape = 's32[1]{0}', space=sflag, size = 0x4, scoped, tag = 'scoped memory for tpu_custom_call.1']
    #allocation5 [shape = 'u8[4096]{0}', space=vmem, size = 0x1000, scoped, tag = 'output window, operand 0, single buffered']
    %6 = vsyncpa [#allocation3], 0
    %7 = vsyncpa [#allocation4], 0
    // Predicated region
    $region2: #{tpu_custom_call.1} parent=1 // pred_check
      _
    $region3: #{tpu_custom_call.1} parent=1 // pred_check_branch
      %9 = sbr.rel (0) target = $region5
    $region4: #{tpu_custom_call.1} parent=1 // pred_region
      %s11 = ssub.s32 256, 256
      %12 = vsyncadd [#allocation3], %s11
      %s14 = sshll.u32 [#allocation2], 4
      %s15 = int_to_ptr.vmem [resolvable:$true] %s14
      %17 = dma.hbm_to_vmem [thread:$0]  %s0, 256, %s15, [#allocation3]
    $region5: #{tpu_custom_call.1} parent=1 // pred_fallthru
      _
    // Predicated region
    $region6: #{tpu_custom_call.1} parent=1 // pred_check
      _
    $region7: #{tpu_custom_call.1} parent=1 // pred_check_branch
      %19 = sbr.rel (0) target = $region9
    $region8: #{tpu_custom_call.1} parent=1 // pred_region
      %20 = dma.done [#allocation3], 256
    $region9: #{tpu_custom_call.1} parent=1 // pred_fallthru
      _
    %p21 = scmp.eq.s32.totalorder 0, 0
    // Predicated region
    $region10: #{tpu_custom_call.1} parent=1 // pred_check
      %p22 = pneg %p21
    $region11: #{tpu_custom_call.1} parent=1 // pred_check_branch
      %24 = sbr.rel (%p22) target = $region13
    $region12: #{tpu_custom_call.1} parent=1 // pred_region
      %vm25 = vcmask 64512
      %26 = vst.msk [vmem:[#allocation5] sm:$0xff] %vm25, 0.0
    $region13: #{tpu_custom_call.1} parent=1 // pred_fallthru
      _
    %v27 = vld [vmem:[#allocation2] sm:$0xff]
    %v28 = vld [vmem:[#allocation2 + $0x8] sm:$0xff]
    %v29 = vld [vmem:[#allocation5] sm:$0xff]
    %30 = vmatprep.subr.mxu0 %v28
    %31 = vmatpush1.xpose.msra.mxu0 %v27
    %32 = vmatprep.subr.mxu0 0.0
    %33 = vmatpush1.xpose.msra.mxu0 0.0
    %34 = vmatprep.subr.mxu0 0.0
    %35 = vmatpush1.xpose.msra.mxu0 0.0
    %36 = vmatprep.subr.mxu0 0.0
    %37 = vmatpush1.xpose.msra.mxu0 0.0
    %38 = vmatprep.subr.mxu0 0.0
    %39 = vmatpush1.xpose.msra.mxu0 0.0
    %40 = vmatprep.subr.mxu0 0.0
    %41 = vmatpush1.xpose.msra.mxu0 0.0
    %42 = vmatprep.subr.mxu0 0.0
    %43 = vmatpush1.xpose.msra.mxu0 0.0
    %44 = vmatprep.subr.mxu0 0.0
    %45 = vmatpush1.xpose.msra.mxu0 0.0
    %46 = vmatprep.subr.mxu0 0.0
    %47 = vmatpush1.xpose.msra.mxu0 0.0
    %48 = vmatprep.subr.mxu0 0.0
    %49 = vmatpush1.xpose.msra.mxu0 0.0
    %50 = vmatprep.subr.mxu0 0.0
    %51 = vmatpush1.xpose.msra.mxu0 0.0
    %52 = vmatprep.subr.mxu0 0.0
    %53 = vmatpush1.xpose.msra.mxu0 0.0
    %54 = vmatprep.subr.mxu0 0.0
    %55 = vmatpush1.xpose.msra.mxu0 0.0
    %56 = vmatprep.subr.mxu0 0.0
    %57 = vmatpush1.xpose.msra.mxu0 0.0
    %58 = vmatprep.subr.mxu0 0.0
    %59 = vmatpush1.xpose.msra.mxu0 0.0
    %60 = vmatprep.subr.mxu0 0.0
    %61 = vmatpush1.xpose.msra.mxu0 0.0
    %62 = vmatprep.subr.mxu0 0.0
    %63 = vmatpush1.xpose.msra.mxu0 0.0
    %64 = vmatprep.subr.mxu0 0.0
    %65 = vmatpush1.xpose.msra.mxu0 0.0
    %66 = vmatprep.subr.mxu0 0.0
    %67 = vmatpush1.xpose.msra.mxu0 0.0
    %68 = vmatprep.subr.mxu0 0.0
    %69 = vmatpush1.xpose.msra.mxu0 0.0
    %70 = vmatprep.subr.mxu0 0.0
    %71 = vmatpush1.xpose.msra.mxu0 0.0
    %72 = vmatprep.subr.mxu0 0.0
    %73 = vmatpush1.xpose.msra.mxu0 0.0
    %74 = vmatprep.subr.mxu0 0.0
    %75 = vmatpush1.xpose.msra.mxu0 0.0
    %76 = vmatprep.subr.mxu0 0.0
    %77 = vmatpush1.xpose.msra.mxu0 0.0
    %78 = vmatprep.subr.mxu0 0.0
    %79 = vmatpush1.xpose.msra.mxu0 0.0
    %80 = vmatprep.subr.mxu0 0.0
    %81 = vmatpush1.xpose.msra.mxu0 0.0
    %82 = vmatprep.subr.mxu0 0.0
    %83 = vmatpush1.xpose.msra.mxu0 0.0
    %84 = vmatprep.subr.mxu0 0.0
    %85 = vmatpush1.xpose.msra.mxu0 0.0
    %86 = vmatprep.subr.mxu0 0.0
    %87 = vmatpush1.xpose.msra.mxu0 0.0
    %88 = vmatprep.subr.mxu0 0.0
    %89 = vmatpush1.xpose.msra.mxu0 0.0
    %90 = vmatprep.subr.mxu0 0.0
    %91 = vmatpush1.xpose.msra.mxu0 0.0
    %92 = vmatprep.subr.mxu0 0.0
    %93 = vmatpush1.xpose.msra.mxu0 0.0
    %94 = vmatprep.mubr.f32.mxu0 %v28
    %95 = vmatmul.mubr.f32.gmra.mrb[0].mxu0 %v27
    %v96 = vpop.f32.mrb[0].mxu0
    %v97 = vadd.f32 0.0, %v96
    %v98 = vpop.f32.mrb[0].mxu0
    %99 = vdwg.mxu0
    %v100 = vadd.f32 %v29, %v97
    %vm101 = vcmask 64512
    %102 = vst.msk [vmem:[#allocation5] sm:$0xff] %vm101, %v100
    // Predicated region
    $region14: #{tpu_custom_call.1} parent=1 // pred_check
      %p103 = pneg %p21
    $region15: #{tpu_custom_call.1} parent=1 // pred_check_branch
      %105 = sbr.rel (%p103) target = $region17
    $region16: #{tpu_custom_call.1} parent=1 // pred_region
      %v106 = vld [vmem:[#allocation5] sm:$0xff]
      %v107 = vmul.f32 %v106, 0.00048828125
      %108 = vst.msk [vmem:[#allocation5] sm:$0xff] %vm101, %v107
    $region17: #{tpu_custom_call.1} parent=1 // pred_fallthru
      _
    // Predicated region
    $region18: #{tpu_custom_call.1} parent=1 // pred_check
      _
    $region19: #{tpu_custom_call.1} parent=1 // pred_check_branch
      %110 = sbr.rel (0) target = $region21
    $region20: #{tpu_custom_call.1} parent=1 // pred_region
      %s112 = ssub.s32 128, 128
      %113 = vsyncadd [#allocation4], %s112
      %s115 = sshll.u32 [#allocation5], 4
      %s116 = int_to_ptr.vmem [resolvable:$true] %s115
      %118 = dma.vmem_to_hbm [thread:$0]  %s116, 128, %s1, [#allocation4]
    $region21: #{tpu_custom_call.1} parent=1 // pred_fallthru
      _
    // Predicated region
    $region22: #{tpu_custom_call.1} parent=1 // pred_check
      _
    $region23: #{tpu_custom_call.1} parent=1 // pred_check_branch
      %120 = sbr.rel (0) target = $region25
    $region24: #{tpu_custom_call.1} parent=1 // pred_region
      %121 = dma.done [#allocation4], 128
    $region25: #{tpu_custom_call.1} parent=1 // pred_fallthru
      _
    %122 = vsyncpa [#allocation3], 1
    %123 = vsyncpa [#allocation4], 1

</llo_original>
